<compile_context>
chip_gen: v7x
topology: tpu7x:2x2x1
jax: 0.10.0
libtpu: 0.0.40
codegen_flags: <defaults>
</compile_context>

<pallas_src>
import functools
import math

import numpy as np
import jax
import jax.numpy as jnp
from jax import lax
from jax.experimental import pallas as pl
from jax.experimental.pallas import tpu as pltpu

# ----------------------------------------------------------------------------- config
# mirrors ImageProjectionLayer.__init__ / config dict (deterministic, in-script)
H_FOV = (-math.pi, math.pi)                                  # horizontal_field_of_view
V_FOV = (-25.0 * math.pi / 180.0, 3.0 * math.pi / 180.0)     # vertical_field_of_view
WIDTH = 128                                                  # horizontal_cells
HEIGHT = 8                                                   # vertical_cells

_PI = math.pi
_U_SCALE = float((WIDTH - 1) / (H_FOV[1] - H_FOV[0]))        # reciprocal-multiply (constants)
_V_SCALE = float((HEIGHT - 1) / (V_FOV[1] - V_FOV[0]))


# ----------------------------------------------------------------------- in-kernel math
def _atan_poly(x):
    # Cephes atanf polynomial, valid for |x| <= tan(pi/8)
    z = x * x
    return ((((8.05374449538e-2 * z - 1.38776856032e-1) * z
              + 1.99777106478e-1) * z - 3.33329491539e-1) * z * x + x)


def _atan(x):
    # range-reduced arctan built from VPU-friendly ops (mul/add/div/select only).
    # exact divides kept (pl.reciprocal(approx=True) would shave VALU cycles but eats
    # into the 5e-3 u/v tolerance at WIDTH-1=127 scaling).
    s = jnp.where(x < 0.0, -1.0, 1.0)
    z = jnp.abs(x)
    big = z > 2.414213562373095          # tan(3*pi/8)
    mid = (z > 0.4142135623730951) & (~big)
    safe_z = jnp.where(big, z, 2.0)      # denom only used on the `big` branch
    x_big = -1.0 / safe_z
    x_mid = (z - 1.0) / (z + 1.0)
    xr = jnp.where(big, x_big, jnp.where(mid, x_mid, z))
    y0 = jnp.where(big, 0.5 * _PI, jnp.where(mid, 0.25 * _PI, 0.0))
    return s * (y0 + _atan_poly(xr))


def _atan2(y, x):
    # torch.atan2 semantics (atan2(0, 0) == 0, range (-pi, pi])
    safe_x = jnp.where(x == 0.0, 1.0, x)
    a = _atan(y / safe_x)
    return jnp.where(
        x > 0.0, a,
        jnp.where(
            x < 0.0,
            jnp.where(y >= 0.0, a + _PI, a - _PI),
            jnp.where(y > 0.0, 0.5 * _PI,
                      jnp.where(y < 0.0, -0.5 * _PI, 0.0))))


# ---------------------------------------------------------------------------- kernels
def _project_kernel(pc_ref, rng_ref, u_ref, v_ref, pix_ref):
    """Fused per-point range + spherical projection + FOV mask (unsorted cloud).

    pc_ref : (1, C, N) raw point cloud (x, y, z, ...extra channels)
    rng_ref: (1, N) f32  range
    u_ref  : (1, N) f32  horizontal image coordinate
    v_ref  : (1, N) f32  vertical image coordinate
    pix_ref: (1, N) i32  flattened pixel id (v*W + u), -1 if outside the FOV
    """
    pc = pc_ref[0]                      # (C, N)
    x = pc[0:1, :]
    y = pc[1:2, :]
    z = pc[2:3, :]

    norm_xy = jnp.sqrt(x * x + y * y)
    rng = jnp.sqrt(x * x + y * y + z * z)

    u = (_atan2(y, x) - H_FOV[0]) * _U_SCALE
    v = (_atan2(z, norm_xy) - V_FOV[0]) * _V_SCALE

    # TODO(synk): torch.round is round-half-to-even; floor(x+0.5) differs only at exact .5 ties.
    ru = jnp.floor(u + 0.5)
    rv = jnp.floor(v + 0.5)
    inside = (ru <= WIDTH - 1.0) & (ru >= 0.0) & (rv <= HEIGHT - 1.0) & (rv >= 0.0)
    uidx = jnp.clip(ru, 0.0, WIDTH - 1.0).astype(jnp.int32)
    vidx = jnp.clip(rv, 0.0, HEIGHT - 1.0).astype(jnp.int32)

    rng_ref[...] = rng
    u_ref[...] = u
    v_ref[...] = v
    pix_ref[...] = jnp.where(inside, vidx * WIDTH + uidx, -1)


def _scatter_kernel(n_total, pix_ref, feat_ref, img_ref, win_ref):
    """Dedup (closest point per pixel wins; points pre-sorted by range) + scatter.

    Grid = (pixel_tiles, point_chunks); the point-chunk axis is the sequential reduction.
      pix_ref : (n_chunk, 1) i32   pixel id per sorted point (-1 = outside FOV)
      feat_ref: (C+1, n_chunk) f32 point features, channels-major
      img_ref : (C+1, p_tile) f32  lane-dense image tile (resident across chunks)
      win_ref : (1, p_tile)  i32   winning sorted-point index per pixel (n_total = empty)
    """
    k = pl.program_id(1)

    @pl.when(k == 0)
    def _():
        img_ref[...] = jnp.zeros_like(img_ref)
        win_ref[...] = jnp.full(win_ref.shape, n_total, jnp.int32)

    n_chunk = feat_ref.shape[1]
    p_tile = img_ref.shape[1]
    row_base = pl.program_id(0) * p_tile

    pix_col = pix_ref[...]                                            # (n_chunk, 1)
    pixel_ids = lax.broadcasted_iota(jnp.int32, (1, p_tile), 1) + row_base
    pt_idx = lax.broadcasted_iota(jnp.float32, (n_chunk, 1), 0)       # reused twice

    # first (lowest-range) point of this chunk hitting each pixel of the tile
    cand = jnp.where(pix_col == pixel_ids, pt_idx, float(n_chunk))    # (n_chunk, p_tile)
    first = jnp.min(cand, axis=0, keepdims=True)                      # (1, p_tile)

    free = win_ref[...] >= n_total                                    # pixel not yet written
    take = (first < n_chunk) & free                                   # (1, p_tile)

    onehot = jnp.where((pt_idx == first) & take, 1.0, 0.0).astype(jnp.float32)
    # 0/1 selector matmul: HIGH (bf16x3) keeps the selected f32 features (near-)exact
    # at roughly half the MXU passes of HIGHEST.
    img_ref[...] += jnp.dot(feat_ref[...], onehot,
                            preferred_element_type=jnp.float32,
                            precision=lax.Precision.HIGH)
    win_ref[...] = jnp.where(take, first.astype(jnp.int32) + k * n_chunk, win_ref[...])


# ---------------------------------------------------------------------------- wrappers
def _dedup_scatter(pixel_id_col, features_cm, height, width, p_tile=None, n_chunk=None):
    """pixel_id_col: (N, 1) int32 (sorted by range); features_cm: (C+1, N) float32.

    Returns (image_cm (C+1, H*W), winner (1, H*W) int32).  Default tile sizes collapse
    the grid to a single step: all live data (~1-2 MiB) fits VMEM on v5e/v6e/v7x.
    """
    n, _ = pixel_id_col.shape
    c1, n2 = features_cm.shape
    assert n == n2
    n_pix = height * width
    if p_tile is None:
        p_tile = n_pix
    if n_chunk is None:
        n_chunk = n
    # TODO(synk): for realistic LiDAR N (50k-200k) keep p_tile=H*W but size n_chunk from the
    # VMEM budget (binding term: (n_chunk, p_tile) cand/onehot temporaries ~ 8*p_tile*n_chunk B);
    # use 256 on v6e/v7x to fill the 256-deep MXU, 128 on v5e.
    assert n_pix % p_tile == 0 and n % n_chunk == 0
    grid = (n_pix // p_tile, n // n_chunk)
    return pl.pallas_call(
        functools.partial(_scatter_kernel, n),
        out_shape=(
            jax.ShapeDtypeStruct((c1, n_pix), jnp.float32),
            jax.ShapeDtypeStruct((1, n_pix), jnp.int32),
        ),
        grid_spec=pltpu.PrefetchScalarGridSpec(
            num_scalar_prefetch=0,
            grid=grid,
            in_specs=[
                pl.BlockSpec((n_chunk, 1), lambda p, k: (k, 0)),
                pl.BlockSpec((c1, n_chunk), lambda p, k: (0, k)),
            ],
            out_specs=(
                pl.BlockSpec((c1, p_tile), lambda p, k: (0, p)),
                pl.BlockSpec((1, p_tile), lambda p, k: (0, p)),
            ),
        ),
        compiler_params=pltpu.CompilerParams(
            dimension_semantics=("parallel", "arbitrary")),
    )(pixel_id_col, features_cm)


def image_projection_forward(point_cloud):
    """Equivalent of ImageProjectionLayer.forward / project_to_img (batch must be 1,
    matching the reference implementation's implicit assumption)."""
    b, c, n = point_cloud.shape
    assert b == 1, "reference module implicitly assumes batch == 1"

    # 1) fused range + projection + FOV mask on the UNSORTED cloud (one Pallas call).
    rng, u, v, pix = pl.pallas_call(
        _project_kernel,
        out_shape=(
            jax.ShapeDtypeStruct((1, n), jnp.float32),
            jax.ShapeDtypeStruct((1, n), jnp.float32),
            jax.ShapeDtypeStruct((1, n), jnp.float32),
            jax.ShapeDtypeStruct((1, n), jnp.int32),
        ),
    )(point_cloud)

    # 2) sort by range ascending (data-dependent permutation -> XLA glue); one fused gather
    #    for all float per-point rows, one small int gather for the pixel ids.
    sort_indices = jnp.argsort(rng[0])
    gathered = jnp.concatenate([point_cloud[0], rng, u, v], axis=0)[:, sort_indices]  # (C+3, N)
    feat_s = gathered[:c + 1]                       # (C+1, N) channels-major, sorted
    u_s = gathered[c + 1:c + 2]                     # (1, N)
    v_s = gathered[c + 2:c + 3]                     # (1, N)
    pix_s = pix[0][sort_indices]                    # (N,)  int32

    # 3) dedup (closest point wins) + scatter; image comes back channels-major / lane-dense,
    #    so a plain reshape already yields NCHW.
    img_cm, winner = _dedup_scatter(pix_s[:, None], feat_s, HEIGHT, WIDTH)
    image = img_cm.reshape(c + 1, HEIGHT, WIDTH)[None]          # (1, C+1, H, W)

    # 4) masks / aux outputs.  The reference's variable-length returns need dynamic shapes
    #    (boolean-mask compaction); we return full-length arrays plus boolean masks instead.
    # TODO(synk): u_filtered / sort_indices[inside][unique] / compacted
    # image_to_pointcloud_indices need dynamic shapes (boolean-mask compaction).
    order = jnp.arange(n, dtype=jnp.int32)
    valid_b = pix_s >= 0
    win_at_pt = winner[0][jnp.clip(pix_s, 0, HEIGHT * WIDTH - 1)]   # gather, not scatter-min
    unique_mask = valid_b & (win_at_pt == order)
    pix_c = jnp.where(valid_b, pix_s, 0)
    image_to_pointcloud_indices = jnp.stack([pix_c // WIDTH, pix_c % WIDTH], axis=-1)[None]

    return dict(
        image=image,                     # (1, C+1, H, W)  == image_representation
        u=u_s, v=v_s,                    # (1, N) each, in sorted-point order
        range=rng,                       # (1, N), original point order
        sort_indices=sort_indices,
        inside_fov=valid_b,
        unique_mask=unique_mask,
        image_to_pointcloud_indices=image_to_pointcloud_indices,
        pixel_id=pix_s[None],            # (1, N), sorted order, -1 = outside FOV
        winner=winner,                   # (1, H*W), sorted-point index per pixel (N = empty)
    )


# -------------------------------------------------------------------------------- main
if __name__ == "__main__":
    key = jax.random.PRNGKey(0)
    B, C, N = 1, 4, 256                       # x, y, z, intensity
    point_cloud = jax.random.normal(key, (B, C, N), dtype=jnp.float32) * 5.0

    out = image_projection_forward(point_cloud)
    jax.block_until_ready(out)

    # ------------------------- lightweight numpy verification -------------------------
    pc_np = np.asarray(point_cloud)
    rng_np = np.linalg.norm(pc_np[:, :3, :], axis=1)
    assert np.allclose(np.asarray(out["range"]), rng_np, atol=1e-4), "range mismatch"

    sort_np = np.asarray(out["sort_indices"])
    pcs_np = pc_np[:, :, sort_np]
    u_np = (np.arctan2(pcs_np[:, 1, :], pcs_np[:, 0, :]) - H_FOV[0]) \
        / (H_FOV[1] - H_FOV[0]) * (WIDTH - 1)
    v_np = (np.arctan2(pcs_np[:, 2, :], np.linalg.norm(pcs_np[:, :2, :], axis=1)) - V_FOV[0]) \
        / (V_FOV[1] - V_FOV[0]) * (HEIGHT - 1)
    assert np.allclose(np.asarray(out["u"]), u_np, atol=5e-3), "u mismatch"
    assert np.allclose(np.asarray(out["v"]), v_np, atol=5e-3), "v mismatch"

    # scatter/dedup reference driven by the kernel-computed pixel ids (serial, like numba loop)
    feat_np = np.concatenate(
        [pcs_np, np.linalg.norm(pcs_np[:, :3, :], axis=1, keepdims=True)], axis=1)[0]  # (C+1, N)
    pid_np = np.asarray(out["pixel_id"])[0]
    img_ref = np.zeros((C + 1, HEIGHT * WIDTH), np.float32)
    occ = np.zeros(HEIGHT * WIDTH, dtype=bool)
    uniq_ref = np.zeros(N, dtype=bool)
    for i in range(N):
        p = int(pid_np[i])
        if p >= 0 and not occ[p]:
            occ[p] = True
            uniq_ref[i] = True
            img_ref[:, p] = feat_np[:, i]
    img_out = np.asarray(out["image"]).reshape(C + 1, HEIGHT * WIDTH)
    assert np.allclose(img_out, img_ref, rtol=1e-2, atol=1e-2), "image scatter mismatch"
    assert np.array_equal(np.asarray(out["unique_mask"]), uniq_ref), "unique_mask mismatch"
    assert out["image"].shape == (1, C + 1, HEIGHT, WIDTH)

    print("KERNEL_OK")
</pallas_src>

<mosaic_0001>
module attributes {stable_mosaic.version = 11 : i64} {
  func.func @_project_kernel(%arg0: memref<1x4x256xf32, #tpu.memory_space<vmem>>, %arg1: memref<1x256xf32, #tpu.memory_space<vmem>>, %arg2: memref<1x256xf32, #tpu.memory_space<vmem>>, %arg3: memref<1x256xf32, #tpu.memory_space<vmem>>, %arg4: memref<1x256xi32, #tpu.memory_space<vmem>>) attributes {dimension_semantics = [], scalar_prefetch = 0 : i64, scratch_operands = 0 : i64, tpu.core_type = #tpu.core_type<tc>} {
    %c0 = arith.constant 0 : index
    %c0_0 = arith.constant 0 : index
    %c0_1 = arith.constant 0 : index
    %0 = vector.load %arg0[%c0, %c0_0, %c0_1] : memref<1x4x256xf32, #tpu.memory_space<vmem>>, vector<1x4x256xf32>
    %1 = vector.shape_cast %0 : vector<1x4x256xf32> to vector<4x256xf32>
    %2 = vector.extract_strided_slice %1 {offsets = [0, 0], sizes = [1, 256], strides = [1, 1]} : vector<4x256xf32> to vector<1x256xf32>
    %3 = vector.extract_strided_slice %1 {offsets = [1, 0], sizes = [1, 256], strides = [1, 1]} : vector<4x256xf32> to vector<1x256xf32>
    %4 = vector.extract_strided_slice %1 {offsets = [2, 0], sizes = [1, 256], strides = [1, 1]} : vector<4x256xf32> to vector<1x256xf32>
    %5 = arith.mulf %2, %2 : vector<1x256xf32>
    %6 = arith.mulf %3, %3 : vector<1x256xf32>
    %7 = arith.addf %5, %6 : vector<1x256xf32>
    %8 = math.sqrt %7 : vector<1x256xf32>
    %9 = arith.mulf %2, %2 : vector<1x256xf32>
    %10 = arith.mulf %3, %3 : vector<1x256xf32>
    %11 = arith.addf %9, %10 : vector<1x256xf32>
    %12 = arith.mulf %4, %4 : vector<1x256xf32>
    %13 = arith.addf %11, %12 : vector<1x256xf32>
    %14 = math.sqrt %13 : vector<1x256xf32>
    %cst = arith.constant 0.000000e+00 : f32
    %15 = vector.broadcast %cst : f32 to vector<1x256xf32>
    %16 = arith.cmpf oeq, %2, %15 : vector<1x256xf32>
    %cst_2 = arith.constant 1.000000e+00 : f32
    %17 = vector.broadcast %cst_2 : f32 to vector<1x256xf32>
    %18 = arith.select %16, %17, %2 : vector<1x256xi1>, vector<1x256xf32>
    %19 = arith.divf %3, %18 : vector<1x256xf32>
    %cst_3 = arith.constant 0.000000e+00 : f32
    %20 = vector.broadcast %cst_3 : f32 to vector<1x256xf32>
    %21 = arith.cmpf olt, %19, %20 : vector<1x256xf32>
    %cst_4 = arith.constant -1.000000e+00 : f32
    %cst_5 = arith.constant 1.000000e+00 : f32
    %22 = vector.broadcast %cst_4 : f32 to vector<1x256xf32>
    %23 = vector.broadcast %cst_5 : f32 to vector<1x256xf32>
    %24 = arith.select %21, %22, %23 : vector<1x256xi1>, vector<1x256xf32>
    %25 = math.absf %19 : vector<1x256xf32>
    %cst_6 = arith.constant 2.41421366 : f32
    %26 = vector.broadcast %cst_6 : f32 to vector<1x256xf32>
    %27 = arith.cmpf ogt, %25, %26 : vector<1x256xf32>
    %cst_7 = arith.constant 0.414213568 : f32
    %28 = vector.broadcast %cst_7 : f32 to vector<1x256xf32>
    %29 = arith.cmpf ogt, %25, %28 : vector<1x256xf32>
    %cst_8 = arith.constant dense<true> : vector<1x256xi1>
    %30 = arith.xori %27, %cst_8 : vector<1x256xi1>
    %31 = arith.andi %29, %30 : vector<1x256xi1>
    %cst_9 = arith.constant 2.000000e+00 : f32
    %32 = vector.broadcast %cst_9 : f32 to vector<1x256xf32>
    %33 = arith.select %27, %25, %32 : vector<1x256xi1>, vector<1x256xf32>
    %cst_10 = arith.constant -1.000000e+00 : f32
    %34 = vector.broadcast %cst_10 : f32 to vector<1x256xf32>
    %35 = arith.divf %34, %33 : vector<1x256xf32>
    %cst_11 = arith.constant 1.000000e+00 : f32
    %36 = vector.broadcast %cst_11 : f32 to vector<1x256xf32>
    %37 = arith.subf %25, %36 : vector<1x256xf32>
    %cst_12 = arith.constant 1.000000e+00 : f32
    %38 = vector.broadcast %cst_12 : f32 to vector<1x256xf32>
    %39 = arith.addf %25, %38 : vector<1x256xf32>
    %40 = arith.divf %37, %39 : vector<1x256xf32>
    %41 = arith.select %31, %40, %25 : vector<1x256xi1>, vector<1x256xf32>
    %42 = arith.select %27, %35, %41 : vector<1x256xi1>, vector<1x256xf32>
    %cst_13 = arith.constant 0.785398185 : f32
    %cst_14 = arith.constant 0.000000e+00 : f32
    %43 = vector.broadcast %cst_13 : f32 to vector<1x256xf32>
    %44 = vector.broadcast %cst_14 : f32 to vector<1x256xf32>
    %45 = arith.select %31, %43, %44 : vector<1x256xi1>, vector<1x256xf32>
    %cst_15 = arith.constant 1.57079637 : f32
    %46 = vector.broadcast %cst_15 : f32 to vector<1x256xf32>
    %47 = arith.select %27, %46, %45 : vector<1x256xi1>, vector<1x256xf32>
    %48 = arith.mulf %42, %42 : vector<1x256xf32>
    %cst_16 = arith.constant 0.0805374458 : f32
    %49 = vector.broadcast %cst_16 : f32 to vector<1x256xf32>
    %50 = arith.mulf %49, %48 : vector<1x256xf32>
    %cst_17 = arith.constant 0.138776854 : f32
    %51 = vector.broadcast %cst_17 : f32 to vector<1x256xf32>
    %52 = arith.subf %50, %51 : vector<1x256xf32>
    %53 = arith.mulf %52, %48 : vector<1x256xf32>
    %cst_18 = arith.constant 0.199777111 : f32
    %54 = vector.broadcast %cst_18 : f32 to vector<1x256xf32>
    %55 = arith.addf %53, %54 : vector<1x256xf32>
    %56 = arith.mulf %55, %48 : vector<1x256xf32>
    %cst_19 = arith.constant 0.333329499 : f32
    %57 = vector.broadcast %cst_19 : f32 to vector<1x256xf32>
    %58 = arith.subf %56, %57 : vector<1x256xf32>
    %59 = arith.mulf %58, %48 : vector<1x256xf32>
    %60 = arith.mulf %59, %42 : vector<1x256xf32>
    %61 = arith.addf %60, %42 : vector<1x256xf32>
    %62 = arith.addf %47, %61 : vector<1x256xf32>
    %63 = arith.mulf %24, %62 : vector<1x256xf32>
    %cst_20 = arith.constant 0.000000e+00 : f32
    %64 = vector.broadcast %cst_20 : f32 to vector<1x256xf32>
    %65 = arith.cmpf ogt, %2, %64 : vector<1x256xf32>
    %cst_21 = arith.constant 0.000000e+00 : f32
    %66 = vector.broadcast %cst_21 : f32 to vector<1x256xf32>
    %67 = arith.cmpf olt, %2, %66 : vector<1x256xf32>
    %cst_22 = arith.constant 0.000000e+00 : f32
    %68 = vector.broadcast %cst_22 : f32 to vector<1x256xf32>
    %69 = arith.cmpf oge, %3, %68 : vector<1x256xf32>
    %cst_23 = arith.constant 3.14159274 : f32
    %70 = vector.broadcast %cst_23 : f32 to vector<1x256xf32>
    %71 = arith.addf %63, %70 : vector<1x256xf32>
    %cst_24 = arith.constant 3.14159274 : f32
    %72 = vector.broadcast %cst_24 : f32 to vector<1x256xf32>
    %73 = arith.subf %63, %72 : vector<1x256xf32>
    %74 = arith.select %69, %71, %73 : vector<1x256xi1>, vector<1x256xf32>
    %cst_25 = arith.constant 0.000000e+00 : f32
    %75 = vector.broadcast %cst_25 : f32 to vector<1x256xf32>
    %76 = arith.cmpf ogt, %3, %75 : vector<1x256xf32>
    %cst_26 = arith.constant 0.000000e+00 : f32
    %77 = vector.broadcast %cst_26 : f32 to vector<1x256xf32>
    %78 = arith.cmpf olt, %3, %77 : vector<1x256xf32>
    %cst_27 = arith.constant -1.57079637 : f32
    %cst_28 = arith.constant 0.000000e+00 : f32
    %79 = vector.broadcast %cst_27 : f32 to vector<1x256xf32>
    %80 = vector.broadcast %cst_28 : f32 to vector<1x256xf32>
    %81 = arith.select %78, %79, %80 : vector<1x256xi1>, vector<1x256xf32>
    %cst_29 = arith.constant 1.57079637 : f32
    %82 = vector.broadcast %cst_29 : f32 to vector<1x256xf32>
    %83 = arith.select %76, %82, %81 : vector<1x256xi1>, vector<1x256xf32>
    %84 = arith.select %67, %74, %83 : vector<1x256xi1>, vector<1x256xf32>
    %85 = arith.select %65, %63, %84 : vector<1x256xi1>, vector<1x256xf32>
    %cst_30 = arith.constant -3.14159274 : f32
    %86 = vector.broadcast %cst_30 : f32 to vector<1x256xf32>
    %87 = arith.subf %85, %86 : vector<1x256xf32>
    %cst_31 = arith.constant 20.212677 : f32
    %88 = vector.broadcast %cst_31 : f32 to vector<1x256xf32>
    %89 = arith.mulf %87, %88 : vector<1x256xf32>
    %cst_32 = arith.constant 0.000000e+00 : f32
    %90 = vector.broadcast %cst_32 : f32 to vector<1x256xf32>
    %91 = arith.cmpf oeq, %8, %90 : vector<1x256xf32>
    %cst_33 = arith.constant 1.000000e+00 : f32
    %92 = vector.broadcast %cst_33 : f32 to vector<1x256xf32>
    %93 = arith.select %91, %92, %8 : vector<1x256xi1>, vector<1x256xf32>
    %94 = arith.divf %4, %93 : vector<1x256xf32>
    %cst_34 = arith.constant 0.000000e+00 : f32
    %95 = vector.broadcast %cst_34 : f32 to vector<1x256xf32>
    %96 = arith.cmpf olt, %94, %95 : vector<1x256xf32>
    %cst_35 = arith.constant -1.000000e+00 : f32
    %cst_36 = arith.constant 1.000000e+00 : f32
    %97 = vector.broadcast %cst_35 : f32 to vector<1x256xf32>
    %98 = vector.broadcast %cst_36 : f32 to vector<1x256xf32>
    %99 = arith.select %96, %97, %98 : vector<1x256xi1>, vector<1x256xf32>
    %100 = math.absf %94 : vector<1x256xf32>
    %cst_37 = arith.constant 2.41421366 : f32
    %101 = vector.broadcast %cst_37 : f32 to vector<1x256xf32>
    %102 = arith.cmpf ogt, %100, %101 : vector<1x256xf32>
    %cst_38 = arith.constant 0.414213568 : f32
    %103 = vector.broadcast %cst_38 : f32 to vector<1x256xf32>
    %104 = arith.cmpf ogt, %100, %103 : vector<1x256xf32>
    %cst_39 = arith.constant dense<true> : vector<1x256xi1>
    %105 = arith.xori %102, %cst_39 : vector<1x256xi1>
    %106 = arith.andi %104, %105 : vector<1x256xi1>
    %cst_40 = arith.constant 2.000000e+00 : f32
    %107 = vector.broadcast %cst_40 : f32 to vector<1x256xf32>
    %108 = arith.select %102, %100, %107 : vector<1x256xi1>, vector<1x256xf32>
    %cst_41 = arith.constant -1.000000e+00 : f32
    %109 = vector.broadcast %cst_41 : f32 to vector<1x256xf32>
    %110 = arith.divf %109, %108 : vector<1x256xf32>
    %cst_42 = arith.constant 1.000000e+00 : f32
    %111 = vector.broadcast %cst_42 : f32 to vector<1x256xf32>
    %112 = arith.subf %100, %111 : vector<1x256xf32>
    %cst_43 = arith.constant 1.000000e+00 : f32
    %113 = vector.broadcast %cst_43 : f32 to vector<1x256xf32>
    %114 = arith.addf %100, %113 : vector<1x256xf32>
    %115 = arith.divf %112, %114 : vector<1x256xf32>
    %116 = arith.select %106, %115, %100 : vector<1x256xi1>, vector<1x256xf32>
    %117 = arith.select %102, %110, %116 : vector<1x256xi1>, vector<1x256xf32>
    %cst_44 = arith.constant 0.785398185 : f32
    %cst_45 = arith.constant 0.000000e+00 : f32
    %118 = vector.broadcast %cst_44 : f32 to vector<1x256xf32>
    %119 = vector.broadcast %cst_45 : f32 to vector<1x256xf32>
    %120 = arith.select %106, %118, %119 : vector<1x256xi1>, vector<1x256xf32>
    %cst_46 = arith.constant 1.57079637 : f32
    %121 = vector.broadcast %cst_46 : f32 to vector<1x256xf32>
    %122 = arith.select %102, %121, %120 : vector<1x256xi1>, vector<1x256xf32>
    %123 = arith.mulf %117, %117 : vector<1x256xf32>
    %cst_47 = arith.constant 0.0805374458 : f32
    %124 = vector.broadcast %cst_47 : f32 to vector<1x256xf32>
    %125 = arith.mulf %124, %123 : vector<1x256xf32>
    %cst_48 = arith.constant 0.138776854 : f32
    %126 = vector.broadcast %cst_48 : f32 to vector<1x256xf32>
    %127 = arith.subf %125, %126 : vector<1x256xf32>
    %128 = arith.mulf %127, %123 : vector<1x256xf32>
    %cst_49 = arith.constant 0.199777111 : f32
    %129 = vector.broadcast %cst_49 : f32 to vector<1x256xf32>
    %130 = arith.addf %128, %129 : vector<1x256xf32>
    %131 = arith.mulf %130, %123 : vector<1x256xf32>
    %cst_50 = arith.constant 0.333329499 : f32
    %132 = vector.broadcast %cst_50 : f32 to vector<1x256xf32>
    %133 = arith.subf %131, %132 : vector<1x256xf32>
    %134 = arith.mulf %133, %123 : vector<1x256xf32>
    %135 = arith.mulf %134, %117 : vector<1x256xf32>
    %136 = arith.addf %135, %117 : vector<1x256xf32>
    %137 = arith.addf %122, %136 : vector<1x256xf32>
    %138 = arith.mulf %99, %137 : vector<1x256xf32>
    %cst_51 = arith.constant 0.000000e+00 : f32
    %139 = vector.broadcast %cst_51 : f32 to vector<1x256xf32>
    %140 = arith.cmpf ogt, %8, %139 : vector<1x256xf32>
    %cst_52 = arith.constant 0.000000e+00 : f32
    %141 = vector.broadcast %cst_52 : f32 to vector<1x256xf32>
    %142 = arith.cmpf olt, %8, %141 : vector<1x256xf32>
    %cst_53 = arith.constant 0.000000e+00 : f32
    %143 = vector.broadcast %cst_53 : f32 to vector<1x256xf32>
    %144 = arith.cmpf oge, %4, %143 : vector<1x256xf32>
    %cst_54 = arith.constant 3.14159274 : f32
    %145 = vector.broadcast %cst_54 : f32 to vector<1x256xf32>
    %146 = arith.addf %138, %145 : vector<1x256xf32>
    %cst_55 = arith.constant 3.14159274 : f32
    %147 = vector.broadcast %cst_55 : f32 to vector<1x256xf32>
    %148 = arith.subf %138, %147 : vector<1x256xf32>
    %149 = arith.select %144, %146, %148 : vector<1x256xi1>, vector<1x256xf32>
    %cst_56 = arith.constant 0.000000e+00 : f32
    %150 = vector.broadcast %cst_56 : f32 to vector<1x256xf32>
    %151 = arith.cmpf ogt, %4, %150 : vector<1x256xf32>
    %cst_57 = arith.constant 0.000000e+00 : f32
    %152 = vector.broadcast %cst_57 : f32 to vector<1x256xf32>
    %153 = arith.cmpf olt, %4, %152 : vector<1x256xf32>
    %cst_58 = arith.constant -1.57079637 : f32
    %cst_59 = arith.constant 0.000000e+00 : f32
    %154 = vector.broadcast %cst_58 : f32 to vector<1x256xf32>
    %155 = vector.broadcast %cst_59 : f32 to vector<1x256xf32>
    %156 = arith.select %153, %154, %155 : vector<1x256xi1>, vector<1x256xf32>
    %cst_60 = arith.constant 1.57079637 : f32
    %157 = vector.broadcast %cst_60 : f32 to vector<1x256xf32>
    %158 = arith.select %151, %157, %156 : vector<1x256xi1>, vector<1x256xf32>
    %159 = arith.select %142, %149, %158 : vector<1x256xi1>, vector<1x256xf32>
    %160 = arith.select %140, %138, %159 : vector<1x256xi1>, vector<1x256xf32>
    %cst_61 = arith.constant -0.436332315 : f32
    %161 = vector.broadcast %cst_61 : f32 to vector<1x256xf32>
    %162 = arith.subf %160, %161 : vector<1x256xf32>
    %cst_62 = arith.constant 14.323945 : f32
    %163 = vector.broadcast %cst_62 : f32 to vector<1x256xf32>
    %164 = arith.mulf %162, %163 : vector<1x256xf32>
    %cst_63 = arith.constant 5.000000e-01 : f32
    %165 = vector.broadcast %cst_63 : f32 to vector<1x256xf32>
    %166 = arith.addf %89, %165 : vector<1x256xf32>
    %167 = math.floor %166 : vector<1x256xf32>
    %cst_64 = arith.constant 5.000000e-01 : f32
    %168 = vector.broadcast %cst_64 : f32 to vector<1x256xf32>
    %169 = arith.addf %164, %168 : vector<1x256xf32>
    %170 = math.floor %169 : vector<1x256xf32>
    %cst_65 = arith.constant 1.270000e+02 : f32
    %171 = vector.broadcast %cst_65 : f32 to vector<1x256xf32>
    %172 = arith.cmpf ole, %167, %171 : vector<1x256xf32>
    %cst_66 = arith.constant 0.000000e+00 : f32
    %173 = vector.broadcast %cst_66 : f32 to vector<1x256xf32>
    %174 = arith.cmpf oge, %167, %173 : vector<1x256xf32>
    %175 = arith.andi %172, %174 : vector<1x256xi1>
    %cst_67 = arith.constant 7.000000e+00 : f32
    %176 = vector.broadcast %cst_67 : f32 to vector<1x256xf32>
    %177 = arith.cmpf ole, %170, %176 : vector<1x256xf32>
    %178 = arith.andi %175, %177 : vector<1x256xi1>
    %cst_68 = arith.constant 0.000000e+00 : f32
    %179 = vector.broadcast %cst_68 : f32 to vector<1x256xf32>
    %180 = arith.cmpf oge, %170, %179 : vector<1x256xf32>
    %181 = arith.andi %178, %180 : vector<1x256xi1>
    %cst_69 = arith.constant 0.000000e+00 : f32
    %cst_70 = arith.constant 1.270000e+02 : f32
    %182 = vector.broadcast %cst_69 : f32 to vector<1x256xf32>
    %183 = arith.maximumf %182, %167 : vector<1x256xf32>
    %184 = vector.broadcast %cst_70 : f32 to vector<1x256xf32>
    %185 = arith.minimumf %184, %183 : vector<1x256xf32>
    %186 = arith.fptosi %185 : vector<1x256xf32> to vector<1x256xi32>
    %cst_71 = arith.constant 0.000000e+00 : f32
    %cst_72 = arith.constant 7.000000e+00 : f32
    %187 = vector.broadcast %cst_71 : f32 to vector<1x256xf32>
    %188 = arith.maximumf %187, %170 : vector<1x256xf32>
    %189 = vector.broadcast %cst_72 : f32 to vector<1x256xf32>
    %190 = arith.minimumf %189, %188 : vector<1x256xf32>
    %191 = arith.fptosi %190 : vector<1x256xf32> to vector<1x256xi32>
    %c0_73 = arith.constant 0 : index
    %c0_74 = arith.constant 0 : index
    %192 = vector.load %arg1[%c0_73, %c0_74] : memref<1x256xf32, #tpu.memory_space<vmem>>, vector<1x256xf32>
    tpu.vector_store %arg1[%c0_73, %c0_74], %14 {strides = array<i32>} : memref<1x256xf32, #tpu.memory_space<vmem>>, vector<1x256xf32>,
    %c0_75 = arith.constant 0 : index
    %c0_76 = arith.constant 0 : index
    %193 = vector.load %arg2[%c0_75, %c0_76] : memref<1x256xf32, #tpu.memory_space<vmem>>, vector<1x256xf32>
    tpu.vector_store %arg2[%c0_75, %c0_76], %89 {strides = array<i32>} : memref<1x256xf32, #tpu.memory_space<vmem>>, vector<1x256xf32>,
    %c0_77 = arith.constant 0 : index
    %c0_78 = arith.constant 0 : index
    %194 = vector.load %arg3[%c0_77, %c0_78] : memref<1x256xf32, #tpu.memory_space<vmem>>, vector<1x256xf32>
    tpu.vector_store %arg3[%c0_77, %c0_78], %164 {strides = array<i32>} : memref<1x256xf32, #tpu.memory_space<vmem>>, vector<1x256xf32>,
    %c128_i32 = arith.constant 128 : i32
    %195 = vector.broadcast %c128_i32 : i32 to vector<1x256xi32>
    %196 = arith.muli %191, %195 : vector<1x256xi32>
    %197 = arith.addi %196, %186 : vector<1x256xi32>
    %c-1_i32 = arith.constant -1 : i32
    %198 = vector.broadcast %c-1_i32 : i32 to vector<1x256xi32>
    %199 = arith.select %181, %197, %198 : vector<1x256xi1>, vector<1x256xi32>
    %c0_79 = arith.constant 0 : index
    %c0_80 = arith.constant 0 : index
    %200 = vector.load %arg4[%c0_79, %c0_80] : memref<1x256xi32, #tpu.memory_space<vmem>>, vector<1x256xi32>
    tpu.vector_store %arg4[%c0_79, %c0_80], %199 {strides = array<i32>} : memref<1x256xi32, #tpu.memory_space<vmem>>, vector<1x256xi32>,
    return
  }
}

</mosaic_0001>

<llo_original>
// kernel: tpu_custom_call.1
$region0: #{tpu_custom_call.1}
  #allocation0 [shape = 'u32[]', space=smem, size = 0x4, offset = 0x4, fixed_abs, tag = 'smem constant byte address 0x4 - core index']
  #allocation1 [shape = 'u32[144,128]{1,0:T(1,128)}', space=vmem, size = 0x12000, scoped, tag = 'internal scratch']
  %s0 = inlined_call_operand.hbm [shape: f32[1,4,256], index: 0, kind: input, shape index: {}]
  %s1 = inlined_call_operand.hbm [shape: f32[1,256], index: 1, kind: output, shape index: {0}]
  %s2 = inlined_call_operand.hbm [shape: f32[1,256], index: 2, kind: output, shape index: {1}]
  %s3 = inlined_call_operand.hbm [shape: f32[1,256], index: 3, kind: output, shape index: {2}]
  %s4 = inlined_call_operand.hbm [shape: s32[1,256], index: 4, kind: output, shape index: {3}]
  %5 = xla_tuple %s1, %s2, %s3, %s4
  %s6 = sld [smem:[#allocation0]]
  $region42: #{tpu_custom_call.1} parent=0
    _
  %s8 = ssub.s32 1, %s6
  %s9 = scalar_select 0, %s8, %s6
  $region1: #{tpu_custom_call.1} parent=0
    #allocation2 [shape = 'u8[4096]{0}', space=vmem, size = 0x1000, scoped, tag = 'input window, operand 0, single buffered']
    #allocation3 [shape = 's32[1]{0}', space=sflag, size = 0x4, scoped, tag = 'scoped memory for tpu_custom_call.1']
    #allocation4 [shape = 's32[1]{0}', space=sflag, size = 0x4, scoped, tag = 'scoped memory for tpu_custom_call.1']
    #allocation5 [shape = 'u8[1024]{0}', space=vmem, size = 0x400, scoped, tag = 'output window, operand 0, single buffered']
    #allocation6 [shape = 'u8[1024]{0}', space=vmem, size = 0x400, scoped, tag = 'output window, operand 1, single buffered']
    #allocation7 [shape = 's32[1]{0}', space=sflag, size = 0x4, scoped, tag = 'scoped memory for tpu_custom_call.1']
    #allocation8 [shape = 'u8[1024]{0}', space=vmem, size = 0x400, scoped, tag = 'output window, operand 2, single buffered']
    #allocation9 [shape = 'u8[1024]{0}', space=vmem, size = 0x400, scoped, tag = 'output window, operand 3, single buffered']
    #allocation10 [shape = 's32[1]{0}', space=sflag, size = 0x4, scoped, tag = 'scoped memory for tpu_custom_call.1']
    %10 = vsyncpa [#allocation3], 0
    %11 = vsyncpa [#allocation4], 0
    %12 = vsyncpa [#allocation7], 0
    %13 = vsyncpa [#allocation10], 0
    // Predicated region
    $region2: #{tpu_custom_call.1} parent=1 // pred_check
      _
    $region3: #{tpu_custom_call.1} parent=1 // pred_check_branch
      %15 = sbr.rel (0) target = $region5
    $region4: #{tpu_custom_call.1} parent=1 // pred_region
      %s17 = ssub.s32 128, 128
      %18 = vsyncadd [#allocation3], %s17
      %s20 = sshll.u32 [#allocation2], 4
      %s21 = int_to_ptr.vmem [resolvable:$true] %s20
      %23 = dma.hbm_to_vmem [thread:$0]  %s0, 128, %s21, [#allocation3]
    $region5: #{tpu_custom_call.1} parent=1 // pred_fallthru
      _
    // Predicated region
    $region6: #{tpu_custom_call.1} parent=1 // pred_check
      _
    $region7: #{tpu_custom_call.1} parent=1 // pred_check_branch
      %25 = sbr.rel (0) target = $region9
    $region8: #{tpu_custom_call.1} parent=1 // pred_region
      %26 = dma.done [#allocation3], 128
    $region9: #{tpu_custom_call.1} parent=1 // pred_fallthru
      _
    %v27 = vld [vmem:[#allocation2] sm:$0xff]
    %v28 = vmul.f32 %v27, %v27
    %v30 = vrot.slane %v28, 5
    %v31 = vrot.slane %v30, 4
    %v33 = vadd.f32 %v28, %v31
    %v34 = vrsqrt.pop %v33
    %v35 = vmul.f32 %v33, %v34
    %vm36 = vcmp.eq.f32.partialorder %v33, inf
    %v37 = vsel %vm36, %v33, %v35
    %vm38 = vcmp.eq.f32.partialorder %v33, 0.0
    %v39 = vand.u32 %v33, 2147483648
    %v40 = vsel %vm38, %v39, %v37
    %v41 = vrot.slane %v28, 6
    %v42 = vrot.slane %v41, 4
    %v44 = vadd.f32 %v33, %v42
    %v45 = vrsqrt.pop %v44
    %v46 = vmul.f32 %v44, %v45
    %vm47 = vcmp.eq.f32.partialorder %v44, inf
    %v48 = vsel %vm47, %v44, %v46
    %vm49 = vcmp.eq.f32.partialorder %v44, 0.0
    %v50 = vand.u32 %v44, 2147483648
    %v51 = vsel %vm49, %v50, %v48
    %vm52 = vcmp.eq.f32.partialorder %v27, 0.0
    %v53 = vsel %vm52, 1.0, %v27
    %v55 = vrot.slane %v53, 7
    %v57 = vrcp.pop %v55
    %v58 = vmul.f32 %v27, %v57
    %vm59 = vcmp.lt.f32.partialorder %v58, 0.0
    %v60 = vsel %vm59, -1.0, 1.0
    %v61 = vand.u32 2147483647, %v58
    %vm62 = vcmp.gt.f32.partialorder %v61, 2.4142137
    %vm63 = vcmp.gt.f32.partialorder %v61, 0.41421357
    %vm64 = vmxor %vm62, 1
    %vm65 = vmand %vm63, %vm64
    %v66 = vsel %vm62, %v61, 2.0
    %v67 = vrcp.pop %v66
    %v68 = vmul.f32 -1.0, %v67
    %v69 = vsub.f32 %v61, 1.0
    %v70 = vadd.f32 %v61, 1.0
    %v71 = vrcp.pop %v70
    %v72 = vmul.f32 %v69, %v71
    %v73 = vsel %vm65, %v72, %v61
    %v74 = vsel %vm62, %v68, %v73
    %v75 = vsel %vm65, 0.7853982, 0.0
    %v76 = vsel %vm62, 1.5707964, %v75
    %v77 = vmul.f32 %v74, %v74
    %v78 = vmul.f32 %v77, 0.080537446
    %v79 = vsub.f32 %v78, 0.13877685
    %v80 = vmul.f32 %v79, %v77
    %v81 = vadd.f32 %v80, 0.19977711
    %v82 = vmul.f32 %v81, %v77
    %v83 = vsub.f32 %v82, 0.3333295
    %v84 = vmul.f32 %v83, %v77
    %v85 = vmul.f32 %v84, %v74
    %v86 = vadd.f32 %v85, %v74
    %v87 = vadd.f32 %v76, %v86
    %v88 = vmul.f32 %v60, %v87
    %vm89 = vcmp.gt.f32.partialorder %v27, 0.0
    %vm90 = vcmp.lt.f32.partialorder %v27, 0.0
    %vm91 = vcmp.ge.f32.partialorder %v27, 0.0
    %v92 = vadd.f32 %v88, 3.1415927
    %v93 = vsub.f32 %v88, 3.1415927
    %v94 = vsel %vm91, %v92, %v93
    %v95 = vsel %vm90, -1.5707964, 0.0
    %v96 = vsel %vm89, 1.5707964, %v95
    %v98 = vrot.slane %v94, 5
    %v99 = vrot.slane %v98, 4
    %v102 = vrot.slane %v96, 5
    %v103 = vrot.slane %v102, 4
    %v105 = vsel %vm90, %v99, %v103
    %v107 = vrot.slane %v88, 5
    %v108 = vrot.slane %v107, 4
    %v110 = vsel %vm89, %v108, %v105
    %v111 = vsub.f32 %v110, -3.1415927
    %v112 = vmul.f32 %v111, 20.212677
    %vm113 = vcmp.eq.f32.partialorder %v40, 0.0
    %v114 = vsel %vm113, 1.0, %v40
    %v116 = vrot.slane %v114, 6
    %v118 = vrcp.pop %v116
    %v119 = vmul.f32 %v27, %v118
    %vm120 = vcmp.lt.f32.partialorder %v119, 0.0
    %v121 = vsel %vm120, -1.0, 1.0
    %v122 = vand.u32 2147483647, %v119
    %vm123 = vcmp.gt.f32.partialorder %v122, 2.4142137
    %vm124 = vcmp.gt.f32.partialorder %v122, 0.41421357
    %vm125 = vmxor %vm123, 1
    %vm126 = vmand %vm124, %vm125
    %v127 = vsel %vm123, %v122, 2.0
    %v128 = vrcp.pop %v127
    %v129 = vmul.f32 -1.0, %v128
    %v130 = vsub.f32 %v122, 1.0
    %v131 = vadd.f32 %v122, 1.0
    %v132 = vrcp.pop %v131
    %v133 = vmul.f32 %v130, %v132
    %v134 = vsel %vm126, %v133, %v122
    %v135 = vsel %vm123, %v129, %v134
    %v136 = vsel %vm126, 0.7853982, 0.0
    %v137 = vsel %vm123, 1.5707964, %v136
    %v138 = vmul.f32 %v135, %v135
    %v139 = vmul.f32 %v138, 0.080537446
    %v140 = vsub.f32 %v139, 0.13877685
    %v141 = vmul.f32 %v140, %v138
    %v142 = vadd.f32 %v141, 0.19977711
    %v143 = vmul.f32 %v142, %v138
    %v144 = vsub.f32 %v143, 0.3333295
    %v145 = vmul.f32 %v144, %v138
    %v146 = vmul.f32 %v145, %v135
    %v147 = vadd.f32 %v146, %v135
    %v148 = vadd.f32 %v137, %v147
    %v149 = vmul.f32 %v121, %v148
    %vm150 = vcmp.gt.f32.partialorder %v40, 0.0
    %vm151 = vcmp.lt.f32.partialorder %v40, 0.0
    %v152 = vadd.f32 %v149, 3.1415927
    %v153 = vsub.f32 %v149, 3.1415927
    %v154 = vsel %vm91, %v152, %v153
    %v156 = vrot.slane %v154, 6
    %v157 = vrot.slane %v156, 4
    %v159 = vrot.slane %v96, 6
    %v160 = vrot.slane %v159, 4
    %v162 = vsel %vm151, %v157, %v160
    %v164 = vrot.slane %v149, 6
    %v165 = vrot.slane %v164, 4
    %v167 = vsel %vm150, %v165, %v162
    %v168 = vsub.f32 %v167, -0.43633232
    %v169 = vmul.f32 %v168, 14.323945
    %v170 = vadd.f32 %v112, 0.5
    %v171 = vfloor.f32 %v170
    %v172 = vadd.f32 %v169, 0.5
    %v173 = vfloor.f32 %v172
    %vm174 = vcmp.le.f32.partialorder %v171, 127.0
    %vm175 = vcmp.ge.f32.partialorder %v171, 0.0
    %vm176 = vmand %vm174, %vm175
    %vm177 = vcmp.le.f32.partialorder %v173, 7.0
    %vm178 = vmand %vm176, %vm177
    %vm179 = vcmp.ge.f32.partialorder %v173, 0.0
    %vm180 = vmand %vm178, %vm179
    %v181 = vmax.f32 %v171, 0.0
    %v182 = vmin.f32 %v181, 127.0
    %v183 = vcvt.f32.s32.to.zero.pseudo %v182
    %v184 = vmax.f32 %v173, 0.0
    %v185 = vmin.f32 %v184, 7.0
    %v186 = vcvt.f32.s32.to.zero.pseudo %v185
    %v189 = vunpack.c.l.s4 1966171168
    %v190 = vunpack.c.0.s8 %v189
    %v191 = vlaneseq
    %v192 = vshrl.u32 %v191, 7
    %v193 = vsub.s32 %v190, %v192
    %v194 = vrot.slane %v51, %v193
    %v196 = vunpack.c.l.s4 1966171168
    %v197 = vunpack.c.0.s8 %v196
    %v198 = vlaneseq
    %v199 = vshrl.u32 %v198, 7
    %v200 = vsub.s32 %v197, %v199
    %v201 = vrot.slane %v194, %v200
    %v203 = vlaneseq
    %vm204 = vcmp.ge.s32.totalorder %v203, 0
    %vm205 = vcmp.lt.s32.totalorder %v203, 256
    %vm206 = vmand %vm204, %vm205
    %207 = vst.msk [vmem:[#allocation5] sm:$0x3] %vm206, %v201
    %v210 = vunpack.c.l.s4 1966171168
    %v211 = vunpack.c.0.s8 %v210
    %v212 = vlaneseq
    %v213 = vshrl.u32 %v212, 7
    %v214 = vsub.s32 %v211, %v213
    %v215 = vrot.slane %v112, %v214
    %v217 = vunpack.c.l.s4 1966171168
    %v218 = vunpack.c.0.s8 %v217
    %v219 = vlaneseq
    %v220 = vshrl.u32 %v219, 7
    %v221 = vsub.s32 %v218, %v220
    %v222 = vrot.slane %v215, %v221
    %224 = vst.msk [vmem:[#allocation6] sm:$0x3] %vm206, %v222
    %v227 = vunpack.c.l.s4 1966171168
    %v228 = vunpack.c.0.s8 %v227
    %v229 = vlaneseq
    %v230 = vshrl.u32 %v229, 7
    %v231 = vsub.s32 %v228, %v230
    %v232 = vrot.slane %v169, %v231
    %v234 = vunpack.c.l.s4 1966171168
    %v235 = vunpack.c.0.s8 %v234
    %v236 = vlaneseq
    %v237 = vshrl.u32 %v236, 7
    %v238 = vsub.s32 %v235, %v237
    %v239 = vrot.slane %v232, %v238
    %241 = vst.msk [vmem:[#allocation8] sm:$0x3] %vm206, %v239
    %v242 = vmul.u32 %v186, 128
    %v243 = vadd.s32 %v242, %v183
    %v244 = vsel %vm180, %v243, 4294967295
    %v246 = vunpack.c.l.s4 1966171168
    %v247 = vunpack.c.0.s8 %v246
    %v248 = vlaneseq
    %v249 = vshrl.u32 %v248, 7
    %v250 = vsub.s32 %v247, %v249
    %v251 = vrot.slane %v244, %v250
    %v253 = vunpack.c.l.s4 1966171168
    %v254 = vunpack.c.0.s8 %v253
    %v255 = vlaneseq
    %v256 = vshrl.u32 %v255, 7
    %v257 = vsub.s32 %v254, %v256
    %v258 = vrot.slane %v251, %v257
    %259 = vst.msk [vmem:[#allocation9] sm:$0x3] %vm206, %v258
    // Predicated region
    $region10: #{tpu_custom_call.1} parent=1 // pred_check
      _
    $region11: #{tpu_custom_call.1} parent=1 // pred_check_branch
      %261 = sbr.rel (0) target = $region13
    $region12: #{tpu_custom_call.1} parent=1 // pred_region
      %s263 = ssub.s32 32, 32
      %264 = vsyncadd [#allocation4], %s263
      %s266 = sshll.u32 [#allocation5], 4
      %s267 = int_to_ptr.vmem [resolvable:$true] %s266
      %269 = dma.vmem_to_hbm [thread:$0]  %s267, 32, %s1, [#allocation4]
    $region13: #{tpu_custom_call.1} parent=1 // pred_fallthru
      _
    // Predicated region
    $region14: #{tpu_custom_call.1} parent=1 // pred_check
      _
    $region15: #{tpu_custom_call.1} parent=1 // pred_check_branch
      %271 = sbr.rel (0) target = $region17
    $region16: #{tpu_custom_call.1} parent=1 // pred_region
      %s273 = ssub.s32 32, 32
      %274 = vsyncadd [#allocation7], %s273
      %s276 = sshll.u32 [#allocation6], 4
      %s277 = int_to_ptr.vmem [resolvable:$true] %s276
      %279 = dma.vmem_to_hbm [thread:$0]  %s277, 32, %s2, [#allocation7]
    $region17: #{tpu_custom_call.1} parent=1 // pred_fallthru
      _
    // Predicated region
    $region18: #{tpu_custom_call.1} parent=1 // pred_check
      _
    $region19: #{tpu_custom_call.1} parent=1 // pred_check_branch
      %281 = sbr.rel (0) target = $region21
    $region20: #{tpu_custom_call.1} parent=1 // pred_region
      %s283 = ssub.s32 32, 32
      %284 = vsyncadd [#allocation7], %s283
      %s286 = sshll.u32 [#allocation8], 4
      %s287 = int_to_ptr.vmem [resolvable:$true] %s286
      %289 = dma.vmem_to_hbm [thread:$0]  %s287, 32, %s3, [#allocation7]
    $region21: #{tpu_custom_call.1} parent=1 // pred_fallthru
      _
    // Predicated region
    $region22: #{tpu_custom_call.1} parent=1 // pred_check
      _
    $region23: #{tpu_custom_call.1} parent=1 // pred_check_branch
      %291 = sbr.rel (0) target = $region25
    $region24: #{tpu_custom_call.1} parent=1 // pred_region
      %s293 = ssub.s32 32, 32
      %294 = vsyncadd [#allocation10], %s293
      %s296 = sshll.u32 [#allocation9], 4
      %s297 = int_to_ptr.vmem [resolvable:$true] %s296
      %299 = dma.vmem_to_hbm [thread:$0]  %s297, 32, %s4, [#allocation10]
    $region25: #{tpu_custom_call.1} parent=1 // pred_fallthru
      _
    // Predicated region
    $region26: #{tpu_custom_call.1} parent=1 // pred_check
      _
    $region27: #{tpu_custom_call.1} parent=1 // pred_check_branch
      %301 = sbr.rel (0) target = $region29
    $region28: #{tpu_custom_call.1} parent=1 // pred_region
      %302 = dma.done [#allocation4], 32
    $region29: #{tpu_custom_call.1} parent=1 // pred_fallthru
      _
    // Predicated region
    $region30: #{tpu_custom_call.1} parent=1 // pred_check
      _
    $region31: #{tpu_custom_call.1} parent=1 // pred_check_branch
      %304 = sbr.rel (0) target = $region33
    $region32: #{tpu_custom_call.1} parent=1 // pred_region
      %305 = dma.done [#allocation7], 32
    $region33: #{tpu_custom_call.1} parent=1 // pred_fallthru
      _
    // Predicated region
    $region34: #{tpu_custom_call.1} parent=1 // pred_check
      _
    $region35: #{tpu_custom_call.1} parent=1 // pred_check_branch
      %307 = sbr.rel (0) target = $region37
    $region36: #{tpu_custom_call.1} parent=1 // pred_region
      %308 = dma.done [#allocation7], 32
    $region37: #{tpu_custom_call.1} parent=1 // pred_fallthru
      _
    // Predicated region
    $region38: #{tpu_custom_call.1} parent=1 // pred_check
      _
    $region39: #{tpu_custom_call.1} parent=1 // pred_check_branch
      %310 = sbr.rel (0) target = $region41
    $region40: #{tpu_custom_call.1} parent=1 // pred_region
      %311 = dma.done [#allocation10], 32
    $region41: #{tpu_custom_call.1} parent=1 // pred_fallthru
      _
    %312 = vsyncpa [#allocation3], 1
    %313 = vsyncpa [#allocation4], 1
    %314 = vsyncpa [#allocation7], 1
    %315 = vsyncpa [#allocation10], 1

</llo_original>
